<compile_context>
chip_gen: v7x
topology: tpu7x:2x2x1
jax: 0.10.0
libtpu: 0.0.40
codegen_flags: <defaults>
</compile_context>

<pallas_src>
import jax
import jax.numpy as jnp
from jax.experimental import pallas as pl
from jax.experimental.pallas import tpu as pltpu

_LANES = 128
_MAX_TILE_ROWS = 512  # 512 x 128 f32 tile = 256 KiB (512 KiB double-buffered)


def _make_fused_abs_sum_kernel(layer_bounds, tile_rows, num_tiles):
    """Build a kernel computing sum(|x|) per layer over a concatenated slab.

    layer_bounds: tuple of (start, end) flat-element ranges (static Python
                  ints), one per selected layer.
    """
    num_layers = len(layer_bounds)

    def kernel(x_ref, o_ref, acc_ref):
        i = pl.program_id(0)

        @pl.when(i == 0)
        def _():
            acc_ref[...] = jnp.zeros_like(acc_ref)

        # Cast + abs in-kernel (VPU); DMA stays in the native dtype.
        absx = jnp.abs(x_ref[...].astype(jnp.float32))

        # Global flat index of every element of this tile (row-major slab).
        row = jax.lax.broadcasted_iota(jnp.int32, (tile_rows, _LANES), 0)
        col = jax.lax.broadcasted_iota(jnp.int32, (tile_rows, _LANES), 1)
        gidx = (i * tile_rows + row) * _LANES + col

        # Per-layer masked partial sums, kept as (1, 128) lane vectors so the
        # expensive cross-lane reduce is deferred to the final grid step.
        # Masking also makes the padded tail of the slab irrelevant.
        for l, (start, end) in enumerate(layer_bounds):
            mask = jnp.logical_and(gidx >= start, gidx < end)
            contrib = jnp.sum(jnp.where(mask, absx, 0.0),
                              axis=0, keepdims=True)            # (1, 128)
            acc_ref[l:l + 1, :] = acc_ref[l:l + 1, :] + contrib

        @pl.when(i == num_tiles - 1)
        def _():
            for l in range(num_layers):
                o_ref[0, l] = jnp.sum(acc_ref[l:l + 1, :])

    return kernel


def basis_l1_loss(basis_layers, skip_1by1=False):
    """JAX/Pallas equivalent of basisL1Loss.forward.

    basis_layers: list of dicts, each with
        'coefficients'     : jnp.ndarray (trainable coefficients, 2-D)
        'org_weight_shape' : tuple (shape of the original conv weight; last
                             dim is the kernel width)
    """
    selected = [l for l in basis_layers
                if (not skip_1by1) or (l["org_weight_shape"][-1] > 1)]
    count = len(selected)
    if count == 0:
        # Mirrors the PyTorch behavior (loss_m / count raises on count == 0).
        raise ZeroDivisionError("basis_l1_loss: no basisConv2d layers selected")

    # Static layout of the fused slab: [layer0 | layer1 | ... | pad].
    sizes = [int(l["coefficients"].size) for l in selected]
    starts = []
    off = 0
    for s in sizes:
        starts.append(off)
        off += s
    n_total = off
    layer_bounds = tuple((st, st + sz) for st, sz in zip(starts, sizes))

    common_dtype = jnp.result_type(*[l["coefficients"].dtype for l in selected])
    flats = [l["coefficients"].reshape(-1).astype(common_dtype)
             for l in selected]

    rows_needed = -(-n_total // _LANES)
    tile_rows = min(_MAX_TILE_ROWS, -(-rows_needed // 8) * 8)
    padded_rows = -(-rows_needed // tile_rows) * tile_rows
    num_tiles = padded_rows // tile_rows
    pad_elems = padded_rows * _LANES - n_total
    if pad_elems:
        flats.append(jnp.zeros((pad_elems,), common_dtype))
    slab = jnp.concatenate(flats).reshape(padded_rows, _LANES)

    acc_rows = -(-count // 8) * 8  # pad accumulator rows to a multiple of 8

    kernel = _make_fused_abs_sum_kernel(layer_bounds, tile_rows, num_tiles)
    sums = pl.pallas_call(
        kernel,
        out_shape=jax.ShapeDtypeStruct((1, count), jnp.float32),
        grid=(num_tiles,),
        in_specs=[pl.BlockSpec((tile_rows, _LANES), lambda i: (i, 0))],
        out_specs=pl.BlockSpec((1, count), lambda i: (0, 0),
                               memory_space=pltpu.SMEM),
        scratch_shapes=[pltpu.VMEM((acc_rows, _LANES), jnp.float32)],
        compiler_params=pltpu.CompilerParams(
            dimension_semantics=("arbitrary",)),
    )(slab)[0]

    means = sums / jnp.asarray(sizes, jnp.float32)
    return jnp.sum(means) / jnp.float32(count)


if __name__ == "__main__":
    key = jax.random.PRNGKey(0)

    # Synthetic "basis_model": a few basisConv2d layers, each owning a 2-D
    # `coefficients` parameter and an `org_weight` shape (NCHW conv weight).
    layer_defs = [
        # (coefficients shape, org_weight shape)
        ((64, 48), (64, 4, 3, 3)),
        ((32, 24), (32, 8, 3, 3)),
        ((16, 12), (16, 4, 1, 1)),   # 1x1 conv
    ]

    basis_layers = []
    for coef_shape, w_shape in layer_defs:
        key, sub = jax.random.split(key)
        basis_layers.append({
            "coefficients": jax.random.normal(sub, coef_shape, jnp.float32),
            "org_weight_shape": w_shape,
        })

    # Case 1: keep all layers.
    loss = basis_l1_loss(basis_layers, skip_1by1=False)
    loss = jax.block_until_ready(loss)
    ref = sum(jnp.mean(jnp.abs(l["coefficients"])) for l in basis_layers)
    ref = ref / len(basis_layers)
    assert jnp.allclose(loss, ref, rtol=1e-6, atol=1e-6)

    # Case 2: skip 1x1 convs.
    loss_skip = basis_l1_loss(basis_layers, skip_1by1=True)
    loss_skip = jax.block_until_ready(loss_skip)
    kept = [l for l in basis_layers if l["org_weight_shape"][-1] > 1]
    ref_skip = sum(jnp.mean(jnp.abs(l["coefficients"])) for l in kept) / len(kept)
    assert jnp.allclose(loss_skip, ref_skip, rtol=1e-6, atol=1e-6)

    print("KERNEL_OK")
</pallas_src>

<mosaic_0001>
module attributes {stable_mosaic.version = 11 : i64} {
  func.func @kernel(%arg0: i32, %arg1: memref<32x128xf32, #tpu.memory_space<vmem>>, %arg2: memref<1x3xf32, #tpu.memory_space<smem>>, %arg3: memref<8x128xf32, #tpu.memory_space<vmem>>) attributes {dimension_semantics = [#tpu.dimension_semantics<arbitrary>], iteration_bounds = array<i64: 1>, scalar_prefetch = 0 : i64, scratch_operands = 1 : i64, tpu.core_type = #tpu.core_type<tc>, window_params = [{transform_indices = @transform_0, window_bounds = array<i64: 32, 128>}, {transform_indices = @transform_1, window_bounds = array<i64: 1, 3>}]} {
    %c0_i32 = arith.constant 0 : i32
    %0 = arith.cmpi eq, %arg0, %c0_i32 : i32
    %1 = arith.extui %0 : i1 to i32
    %c0_i32_0 = arith.constant 0 : i32
    %2 = arith.cmpi ne, %1, %c0_i32_0 : i32
    scf.if %2 {
      %cst_22 = arith.constant 0.000000e+00 : f32
      %52 = vector.broadcast %cst_22 : f32 to vector<8x128xf32>
      %c0_23 = arith.constant 0 : index
      %c0_24 = arith.constant 0 : index
      %53 = vector.load %arg3[%c0_23, %c0_24] : memref<8x128xf32, #tpu.memory_space<vmem>>, vector<8x128xf32>
      tpu.vector_store %arg3[%c0_23, %c0_24], %52 {strides = array<i32>} : memref<8x128xf32, #tpu.memory_space<vmem>>, vector<8x128xf32>,
    } else {
    }
    %c0 = arith.constant 0 : index
    %c0_1 = arith.constant 0 : index
    %3 = vector.load %arg1[%c0, %c0_1] : memref<32x128xf32, #tpu.memory_space<vmem>>, vector<32x128xf32>
    %4 = math.absf %3 : vector<32x128xf32>
    %5 = tpu.iota {dimensions = array<i32: 0>} : vector<32x128xi32>
    %6 = tpu.iota {dimensions = array<i32: 1>} : vector<32x128xi32>
    %c32_i32 = arith.constant 32 : i32
    %7 = arith.muli %arg0, %c32_i32 : i32
    %8 = vector.broadcast %7 : i32 to vector<32x128xi32>
    %9 = arith.addi %8, %5 : vector<32x128xi32>
    %c128_i32 = arith.constant 128 : i32
    %10 = vector.broadcast %c128_i32 : i32 to vector<32x128xi32>
    %11 = arith.muli %9, %10 : vector<32x128xi32>
    %12 = arith.addi %11, %6 : vector<32x128xi32>
    %c0_i32_2 = arith.constant 0 : i32
    %13 = vector.broadcast %c0_i32_2 : i32 to vector<32x128xi32>
    %14 = arith.cmpi sge, %12, %13 : vector<32x128xi32>
    %c3072_i32 = arith.constant 3072 : i32
    %15 = vector.broadcast %c3072_i32 : i32 to vector<32x128xi32>
    %16 = arith.cmpi slt, %12, %15 : vector<32x128xi32>
    %17 = arith.andi %14, %16 : vector<32x128xi1>
    %cst = arith.constant 0.000000e+00 : f32
    %18 = vector.broadcast %cst : f32 to vector<32x128xf32>
    %19 = arith.select %17, %4, %18 : vector<32x128xi1>, vector<32x128xf32>
    %cst_3 = arith.constant dense<0.000000e+00> : vector<128xf32>
    %20 = vector.multi_reduction <add>, %19, %cst_3 [0] : vector<32x128xf32> to vector<128xf32>
    %21 = vector.shape_cast %20 : vector<128xf32> to vector<1x128xf32>
    %c0_4 = arith.constant 0 : index
    %c0_5 = arith.constant 0 : index
    %22 = vector.load %arg3[%c0_4, %c0_5] : memref<8x128xf32, #tpu.memory_space<vmem>>, vector<1x128xf32>
    %23 = arith.addf %22, %21 : vector<1x128xf32>
    %c0_6 = arith.constant 0 : index
    %c0_7 = arith.constant 0 : index
    %24 = vector.load %arg3[%c0_6, %c0_7] : memref<8x128xf32, #tpu.memory_space<vmem>>, vector<1x128xf32>
    tpu.vector_store %arg3[%c0_6, %c0_7], %23 {strides = array<i32>} : memref<8x128xf32, #tpu.memory_space<vmem>>, vector<1x128xf32>,
    %c3072_i32_8 = arith.constant 3072 : i32
    %25 = vector.broadcast %c3072_i32_8 : i32 to vector<32x128xi32>
    %26 = arith.cmpi sge, %12, %25 : vector<32x128xi32>
    %c3840_i32 = arith.constant 3840 : i32
    %27 = vector.broadcast %c3840_i32 : i32 to vector<32x128xi32>
    %28 = arith.cmpi slt, %12, %27 : vector<32x128xi32>
    %29 = arith.andi %26, %28 : vector<32x128xi1>
    %cst_9 = arith.constant 0.000000e+00 : f32
    %30 = vector.broadcast %cst_9 : f32 to vector<32x128xf32>
    %31 = arith.select %29, %4, %30 : vector<32x128xi1>, vector<32x128xf32>
    %cst_10 = arith.constant dense<0.000000e+00> : vector<128xf32>
    %32 = vector.multi_reduction <add>, %31, %cst_10 [0] : vector<32x128xf32> to vector<128xf32>
    %33 = vector.shape_cast %32 : vector<128xf32> to vector<1x128xf32>
    %c1 = arith.constant 1 : index
    %c0_11 = arith.constant 0 : index
    %34 = vector.load %arg3[%c1, %c0_11] : memref<8x128xf32, #tpu.memory_space<vmem>>, vector<1x128xf32>
    %35 = arith.addf %34, %33 : vector<1x128xf32>
    %c1_12 = arith.constant 1 : index
    %c0_13 = arith.constant 0 : index
    %36 = vector.load %arg3[%c1_12, %c0_13] : memref<8x128xf32, #tpu.memory_space<vmem>>, vector<1x128xf32>
    tpu.vector_store %arg3[%c1_12, %c0_13], %35 {strides = array<i32>} : memref<8x128xf32, #tpu.memory_space<vmem>>, vector<1x128xf32>,
    %c3840_i32_14 = arith.constant 3840 : i32
    %37 = vector.broadcast %c3840_i32_14 : i32 to vector<32x128xi32>
    %38 = arith.cmpi sge, %12, %37 : vector<32x128xi32>
    %c4032_i32 = arith.constant 4032 : i32
    %39 = vector.broadcast %c4032_i32 : i32 to vector<32x128xi32>
    %40 = arith.cmpi slt, %12, %39 : vector<32x128xi32>
    %41 = arith.andi %38, %40 : vector<32x128xi1>
    %cst_15 = arith.constant 0.000000e+00 : f32
    %42 = vector.broadcast %cst_15 : f32 to vector<32x128xf32>
    %43 = arith.select %41, %4, %42 : vector<32x128xi1>, vector<32x128xf32>
    %cst_16 = arith.constant dense<0.000000e+00> : vector<128xf32>
    %44 = vector.multi_reduction <add>, %43, %cst_16 [0] : vector<32x128xf32> to vector<128xf32>
    %45 = vector.shape_cast %44 : vector<128xf32> to vector<1x128xf32>
    %c2 = arith.constant 2 : index
    %c0_17 = arith.constant 0 : index
    %46 = vector.load %arg3[%c2, %c0_17] : memref<8x128xf32, #tpu.memory_space<vmem>>, vector<1x128xf32>
    %47 = arith.addf %46, %45 : vector<1x128xf32>
    %c2_18 = arith.constant 2 : index
    %c0_19 = arith.constant 0 : index
    %48 = vector.load %arg3[%c2_18, %c0_19] : memref<8x128xf32, #tpu.memory_space<vmem>>, vector<1x128xf32>
    tpu.vector_store %arg3[%c2_18, %c0_19], %47 {strides = array<i32>} : memref<8x128xf32, #tpu.memory_space<vmem>>, vector<1x128xf32>,
    %c0_i32_20 = arith.constant 0 : i32
    %49 = arith.cmpi eq, %arg0, %c0_i32_20 : i32
    %50 = arith.extui %49 : i1 to i32
    %c0_i32_21 = arith.constant 0 : i32
    %51 = arith.cmpi ne, %50, %c0_i32_21 : i32
    scf.if %51 {
      %c0_22 = arith.constant 0 : index
      %c0_23 = arith.constant 0 : index
      %52 = vector.load %arg3[%c0_22, %c0_23] : memref<8x128xf32, #tpu.memory_space<vmem>>, vector<1x128xf32>
      %53 = vector.shape_cast %52 : vector<1x128xf32> to vector<1x1x128xf32>
      %cst_24 = arith.constant dense<0.000000e+00> : vector<1xf32>
      %54 = vector.multi_reduction <add>, %53, %cst_24 [1, 2] : vector<1x1x128xf32> to vector<1xf32>
      %55 = vector.shape_cast %54 : vector<1xf32> to vector<1x1x1xf32>
      %56 = vector.extract %55[0, 0, 0] : f32 from vector<1x1x1xf32>
      %c0_25 = arith.constant 0 : index
      %c0_26 = arith.constant 0 : index
      %57 = memref.load %arg2[%c0_25, %c0_26] : memref<1x3xf32, #tpu.memory_space<smem>>
      memref.store %56, %arg2[%c0_25, %c0_26] : memref<1x3xf32, #tpu.memory_space<smem>>
      %c1_27 = arith.constant 1 : index
      %c0_28 = arith.constant 0 : index
      %58 = vector.load %arg3[%c1_27, %c0_28] : memref<8x128xf32, #tpu.memory_space<vmem>>, vector<1x128xf32>
      %59 = vector.shape_cast %58 : vector<1x128xf32> to vector<1x1x128xf32>
      %cst_29 = arith.constant dense<0.000000e+00> : vector<1xf32>
      %60 = vector.multi_reduction <add>, %59, %cst_29 [1, 2] : vector<1x1x128xf32> to vector<1xf32>
      %61 = vector.shape_cast %60 : vector<1xf32> to vector<1x1x1xf32>
      %62 = vector.extract %61[0, 0, 0] : f32 from vector<1x1x1xf32>
      %c0_30 = arith.constant 0 : index
      %c1_31 = arith.constant 1 : index
      %63 = memref.load %arg2[%c0_30, %c1_31] : memref<1x3xf32, #tpu.memory_space<smem>>
      memref.store %62, %arg2[%c0_30, %c1_31] : memref<1x3xf32, #tpu.memory_space<smem>>
      %c2_32 = arith.constant 2 : index
      %c0_33 = arith.constant 0 : index
      %64 = vector.load %arg3[%c2_32, %c0_33] : memref<8x128xf32, #tpu.memory_space<vmem>>, vector<1x128xf32>
      %65 = vector.shape_cast %64 : vector<1x128xf32> to vector<1x1x128xf32>
      %cst_34 = arith.constant dense<0.000000e+00> : vector<1xf32>
      %66 = vector.multi_reduction <add>, %65, %cst_34 [1, 2] : vector<1x1x128xf32> to vector<1xf32>
      %67 = vector.shape_cast %66 : vector<1xf32> to vector<1x1x1xf32>
      %68 = vector.extract %67[0, 0, 0] : f32 from vector<1x1x1xf32>
      %c0_35 = arith.constant 0 : index
      %c2_36 = arith.constant 2 : index
      %69 = memref.load %arg2[%c0_35, %c2_36] : memref<1x3xf32, #tpu.memory_space<smem>>
      memref.store %68, %arg2[%c0_35, %c2_36] : memref<1x3xf32, #tpu.memory_space<smem>>
    } else {
    }
    return
  }
  func.func @transform_0(%arg0: i32) -> (i32, i32) {
    %c0_i32 = arith.constant 0 : i32
    %c0_i32_0 = arith.constant 0 : i32
    return %arg0, %c0_i32 : i32, i32
  }
  func.func @transform_1(%arg0: i32) -> (i32, i32) {
    %c0_i32 = arith.constant 0 : i32
    %c0_i32_0 = arith.constant 0 : i32
    %c0_i32_1 = arith.constant 0 : i32
    return %c0_i32, %c0_i32_0 : i32, i32
  }
}

</mosaic_0001>

<llo_original>
// kernel: tpu_custom_call.1
$region0: #{tpu_custom_call.1}
  #allocation0 [shape = 'u32[]', space=smem, size = 0x4, offset = 0x4, fixed_abs, tag = 'smem constant byte address 0x4 - core index']
  #allocation1 [shape = 'u32[144,128]{1,0:T(1,128)}', space=vmem, size = 0x12000, scoped, tag = 'internal scratch']
  #allocation2 [shape = 'f32[8,128]{1,0:T(8,128)}', space=vmem, size = 0x1000, scoped, tag = 'scratch operand']
  %s0 = inlined_call_operand.hbm [shape: f32[32,128], index: 0, kind: input, shape index: {}]
  %s1 = inlined_call_operand.hbm [shape: f32[1,3], index: 1, kind: output, shape index: {}]
  %s2 = sld [smem:[#allocation0]]
  $region26: #{tpu_custom_call.1} parent=0
    _
  %s4 = ssub.s32 1, %s2
  %s5 = scalar_select 0, %s4, %s2
  $region1: #{tpu_custom_call.1} parent=0
    #allocation3 [shape = 'u8[16384]{0}', space=vmem, size = 0x4000, scoped, tag = 'input window, operand 0, single buffered']
    #allocation4 [shape = 's32[1]{0}', space=sflag, size = 0x4, scoped, tag = 'scoped memory for tpu_custom_call.1']
    #allocation5 [shape = 's32[1]{0}', space=sflag, size = 0x4, scoped, tag = 'scoped memory for tpu_custom_call.1']
    #allocation6 [shape = 'u8[512]{0}', space=smem, size = 0x200, scoped, tag = 'output window, operand 0, single buffered']
    %6 = vsyncpa [#allocation4], 0
    %7 = vsyncpa [#allocation5], 0
    // Predicated region
    $region2: #{tpu_custom_call.1} parent=1 // pred_check
      _
    $region3: #{tpu_custom_call.1} parent=1 // pred_check_branch
      %9 = sbr.rel (0) target = $region5
    $region4: #{tpu_custom_call.1} parent=1 // pred_region
      %s11 = ssub.s32 512, 512
      %12 = vsyncadd [#allocation4], %s11
      %s13 = sshll.u32 [#allocation3], 4
      %s14 = int_to_ptr.vmem [resolvable:$true] %s13
      %19 = dma.hbm_to_vmem [thread:$0]  %s0, 512, %s14, [#allocation4], 128, 128, 8
    $region5: #{tpu_custom_call.1} parent=1 // pred_fallthru
      _
    // Predicated region
    $region6: #{tpu_custom_call.1} parent=1 // pred_check
      _
    $region7: #{tpu_custom_call.1} parent=1 // pred_check_branch
      %21 = sbr.rel (0) target = $region9
    $region8: #{tpu_custom_call.1} parent=1 // pred_region
      %22 = dma.done [#allocation4], 512
    $region9: #{tpu_custom_call.1} parent=1 // pred_fallthru
      _
    %p23 = scmp.eq.s32.totalorder 0, 0
    // Predicated region
    $region10: #{tpu_custom_call.1} parent=1 // pred_check
      %p24 = pneg %p23
    $region11: #{tpu_custom_call.1} parent=1 // pred_check_branch
      %26 = sbr.rel (%p24) target = $region13
    $region12: #{tpu_custom_call.1} parent=1 // pred_region
      %27 = vst [vmem:[#allocation2] sm:$0xff] 0.0
    $region13: #{tpu_custom_call.1} parent=1 // pred_fallthru
      _
    %v28 = vld [vmem:[#allocation3] sm:$0xff]
    %v29 = vld [vmem:[#allocation3 + $0x8] sm:$0xff]
    %v30 = vld [vmem:[#allocation3 + $0x10] sm:$0xff]
    %v31 = vld [vmem:[#allocation3 + $0x18] sm:$0xff]
    %v32 = vand.u32 2147483647, %v28
    %v33 = vand.u32 2147483647, %v29
    %v34 = vand.u32 2147483647, %v30
    %v35 = vand.u32 2147483647, %v31
    %v36 = vlaneseq
    %v37 = vshrl.u32 %v36, 7
    %v38 = vadd.s32 %v37, 8
    %v39 = vadd.s32 %v37, 16
    %v40 = vadd.s32 %v37, 24
    %v41 = vlaneseq
    %v42 = vand.u32 %v41, 127
    %s43 = smul.u32 0, 32
    %v44 = vstv %s43
    %v45 = vadd.s32 %v44, %v37
    %v46 = vadd.s32 %v44, %v38
    %v47 = vadd.s32 %v44, %v39
    %v48 = vadd.s32 %v44, %v40
    %v49 = vmul.u32 %v45, 128
    %v50 = vmul.u32 %v46, 128
    %v51 = vmul.u32 %v47, 128
    %v52 = vmul.u32 %v48, 128
    %v53 = vadd.s32 %v49, %v42
    %v54 = vadd.s32 %v50, %v42
    %v55 = vadd.s32 %v51, %v42
    %v56 = vadd.s32 %v52, %v42
    %vm57 = vcmp.ge.s32.totalorder %v53, 0
    %vm58 = vcmp.ge.s32.totalorder %v54, 0
    %vm59 = vcmp.ge.s32.totalorder %v55, 0
    %vm60 = vcmp.ge.s32.totalorder %v56, 0
    %vm61 = vcmp.lt.s32.totalorder %v53, 3072
    %vm62 = vcmp.lt.s32.totalorder %v54, 3072
    %vm63 = vcmp.lt.s32.totalorder %v55, 3072
    %vm64 = vcmp.lt.s32.totalorder %v56, 3072
    %vm65 = vmand %vm57, %vm61
    %vm66 = vmand %vm58, %vm62
    %vm67 = vmand %vm59, %vm63
    %vm68 = vmand %vm60, %vm64
    %v69 = vsel %vm65, %v32, 0.0
    %v70 = vsel %vm66, %v33, 0.0
    %v71 = vsel %vm67, %v34, 0.0
    %v72 = vsel %vm68, %v35, 0.0
    %v73 = vadd.f32 %v69, %v70
    %v74 = vadd.f32 %v73, %v71
    %v75 = vadd.f32 %v74, %v72
    %v76 = vrot.slane %v75, 4
    %v77 = vadd.f32 %v75, %v76
    %v78 = vrot.slane %v77, 2
    %v79 = vadd.f32 %v77, %v78
    %v80 = vrot.slane %v79, 1
    %v81 = vadd.f32 %v79, %v80
    %v82 = vld [vmem:[#allocation2] sm:$0x1]
    %v83 = vadd.f32 %v82, %v81
    %84 = vst [vmem:[#allocation2] sm:$0x1] %v83
    %vm85 = vcmp.ge.s32.totalorder %v53, 3072
    %vm86 = vcmp.ge.s32.totalorder %v54, 3072
    %vm87 = vcmp.ge.s32.totalorder %v55, 3072
    %vm88 = vcmp.ge.s32.totalorder %v56, 3072
    %vm89 = vcmp.lt.s32.totalorder %v53, 3840
    %vm90 = vcmp.lt.s32.totalorder %v54, 3840
    %vm91 = vcmp.lt.s32.totalorder %v55, 3840
    %vm92 = vcmp.lt.s32.totalorder %v56, 3840
    %vm93 = vmand %vm85, %vm89
    %vm94 = vmand %vm86, %vm90
    %vm95 = vmand %vm87, %vm91
    %vm96 = vmand %vm88, %vm92
    %v97 = vsel %vm93, %v32, 0.0
    %v98 = vsel %vm94, %v33, 0.0
    %v99 = vsel %vm95, %v34, 0.0
    %v100 = vsel %vm96, %v35, 0.0
    %v101 = vadd.f32 %v97, %v98
    %v102 = vadd.f32 %v101, %v99
    %v103 = vadd.f32 %v102, %v100
    %v104 = vrot.slane %v103, 4
    %v105 = vadd.f32 %v103, %v104
    %v106 = vrot.slane %v105, 2
    %v107 = vadd.f32 %v105, %v106
    %v108 = vrot.slane %v107, 1
    %v109 = vadd.f32 %v107, %v108
    %v110 = vld [vmem:[#allocation2 + $0x1] sm:$0x1]
    %v111 = vadd.f32 %v110, %v109
    %112 = vst [vmem:[#allocation2 + $0x1] sm:$0x1] %v111
    %vm113 = vcmp.ge.s32.totalorder %v53, 3840
    %vm114 = vcmp.ge.s32.totalorder %v54, 3840
    %vm115 = vcmp.ge.s32.totalorder %v55, 3840
    %vm116 = vcmp.ge.s32.totalorder %v56, 3840
    %vm117 = vcmp.lt.s32.totalorder %v53, 4032
    %vm118 = vcmp.lt.s32.totalorder %v54, 4032
    %vm119 = vcmp.lt.s32.totalorder %v55, 4032
    %vm120 = vcmp.lt.s32.totalorder %v56, 4032
    %vm121 = vmand %vm113, %vm117
    %vm122 = vmand %vm114, %vm118
    %vm123 = vmand %vm115, %vm119
    %vm124 = vmand %vm116, %vm120
    %v125 = vsel %vm121, %v32, 0.0
    %v126 = vsel %vm122, %v33, 0.0
    %v127 = vsel %vm123, %v34, 0.0
    %v128 = vsel %vm124, %v35, 0.0
    %v129 = vadd.f32 %v125, %v126
    %v130 = vadd.f32 %v129, %v127
    %v131 = vadd.f32 %v130, %v128
    %v132 = vrot.slane %v131, 4
    %v133 = vadd.f32 %v131, %v132
    %v134 = vrot.slane %v133, 2
    %v135 = vadd.f32 %v133, %v134
    %v136 = vrot.slane %v135, 1
    %v137 = vadd.f32 %v135, %v136
    %v138 = vld [vmem:[#allocation2 + $0x2] sm:$0x1]
    %v139 = vadd.f32 %v138, %v137
    %140 = vst [vmem:[#allocation2 + $0x2] sm:$0x1] %v139
    // Predicated region
    $region14: #{tpu_custom_call.1} parent=1 // pred_check
      %p141 = pneg %p23
    $region15: #{tpu_custom_call.1} parent=1 // pred_check_branch
      %143 = sbr.rel (%p141) target = $region17
    $region16: #{tpu_custom_call.1} parent=1 // pred_region
      %v144 = vld [vmem:[#allocation2] sm:$0x1]
      %vm145 = vcmask 1040384
      %v146 = vsel %vm145, %v144, 0.0
      %147 = vadd.xlane.f32.xlu0 %v146
      %v148 = vpop.xlane.xlu0 %147
      %v149 = vrot.slane %v148, 4
      %v150 = vadd.f32 %v148, %v149
      %v151 = vrot.slane %v150, 2
      %v152 = vadd.f32 %v150, %v151
      %v153 = vrot.slane %v152, 1
      %v154 = vadd.f32 %v152, %v153
      %s155 = vtos %v154
      %s156 = scalar_lea.smem [#allocation6], 0
      %157 = sst [smem:[%s156]] %s155
      %v158 = vld [vmem:[#allocation2 + $0x1] sm:$0x1]
      %v159 = vsel %vm145, %v158, 0.0
      %160 = vadd.xlane.f32.xlu0 %v159
      %v161 = vpop.xlane.xlu0 %160
      %v162 = vrot.slane %v161, 4
      %v163 = vadd.f32 %v161, %v162
      %v164 = vrot.slane %v163, 2
      %v165 = vadd.f32 %v163, %v164
      %v166 = vrot.slane %v165, 1
      %v167 = vadd.f32 %v165, %v166
      %s168 = vtos %v167
      %s169 = scalar_lea.smem [#allocation6], 1
      %170 = sst [smem:[%s169]] %s168
      %v171 = vld [vmem:[#allocation2 + $0x2] sm:$0x1]
      %v172 = vsel %vm145, %v171, 0.0
      %173 = vadd.xlane.f32.xlu0 %v172
      %v174 = vpop.xlane.xlu0 %173
      %v175 = vrot.slane %v174, 4
      %v176 = vadd.f32 %v174, %v175
      %v177 = vrot.slane %v176, 2
      %v178 = vadd.f32 %v176, %v177
      %v179 = vrot.slane %v178, 1
      %v180 = vadd.f32 %v178, %v179
      %s181 = vtos %v180
      %s182 = scalar_lea.smem [#allocation6], 2
      %183 = sst [smem:[%s182]] %s181
    $region17: #{tpu_custom_call.1} parent=1 // pred_fallthru
      _
    // Predicated region
    $region18: #{tpu_custom_call.1} parent=1 // pred_check
      _
    $region19: #{tpu_custom_call.1} parent=1 // pred_check_branch
      %185 = sbr.rel (0) target = $region21
    $region20: #{tpu_custom_call.1} parent=1 // pred_region
      %s187 = ssub.s32 16, 16
      %188 = vsyncadd [#allocation5], %s187
      %191 = dma.smem_to_hbm [#allocation6], 16, %s1, [#allocation5]
    $region21: #{tpu_custom_call.1} parent=1 // pred_fallthru
      _
    // Predicated region
    $region22: #{tpu_custom_call.1} parent=1 // pred_check
      _
    $region23: #{tpu_custom_call.1} parent=1 // pred_check_branch
      %193 = sbr.rel (0) target = $region25
    $region24: #{tpu_custom_call.1} parent=1 // pred_region
      %194 = dma.done [#allocation5], 16
    $region25: #{tpu_custom_call.1} parent=1 // pred_fallthru
      _
    %195 = sfence
    %196 = vsyncpa [#allocation4], 1
    %197 = vsyncpa [#allocation5], 1

</llo_original>
